<compile_context>
chip_gen: v7x
topology: tpu7x:2x2x1
jax: 0.10.0
libtpu: 0.0.40
codegen_flags: <defaults>
</compile_context>

<pallas_src>
import functools

import jax
import jax.numpy as jnp
from jax.experimental import pallas as pl
from jax.experimental.pallas import tpu as pltpu


def _round_up(n: int, m: int) -> int:
    return ((n + m - 1) // m) * m


def pack_network_params(hidden_params, act_params, sig_params):
    """Pack all Linear params into one f32 slab with static, 8-aligned row offsets.

    Args:
      hidden_params: list of (W_i [in, out], b_i [1, out] or [out]).
      act_params:    (W_a [H, output_size], b_a).
      sig_params:    (W_s [H, 1],           b_s).

    Returns:
      slab:        [R, C] float32 array (C = widest layer output).
      layer_meta:  tuple of (w_row_off, in_dim, out_dim, b_row_off) per hidden layer.
      head_meta:   (w_row_off, in_dim, out_total, b_row_off) for the fused head.
      output_size: number of action outputs (head width minus the sigmoid column).
    """
    wa, ba = act_params
    ws, bs = sig_params
    wa = jnp.asarray(wa, jnp.float32)
    ws = jnp.asarray(ws, jnp.float32)
    assert ws.shape[1] == 1, "sigmoid head weight must be [H, 1] (pre-transposed)"
    assert wa.shape[0] == ws.shape[0], "action/sigmoid heads must share input dim"

    # Fuse the two heads into a single matmul: [H, output_size + 1].
    head_w = jnp.concatenate([wa, ws], axis=1)
    head_b = jnp.concatenate(
        [jnp.reshape(jnp.asarray(ba, jnp.float32), (1, -1)),
         jnp.reshape(jnp.asarray(bs, jnp.float32), (1, -1))],
        axis=1,
    )

    weights = [jnp.asarray(w, jnp.float32) for w, _ in hidden_params] + [head_w]
    biases = [jnp.reshape(jnp.asarray(b, jnp.float32), (1, -1))
              for _, b in hidden_params] + [head_b]

    # Layout sanity checks (guards against PyTorch-layout [out, in] weights).
    for i in range(len(weights) - 1):
        assert weights[i].shape[1] == weights[i + 1].shape[0], (
            "weight chain mismatch: expected pre-transposed [in, out] weights")
    for w, b in zip(weights, biases):
        assert b.shape == (1, w.shape[1]), "bias must be [1, out] matching weight"

    ncols = max(int(w.shape[1]) for w in weights)

    blocks = []
    w_offsets = []
    b_offsets = []
    offset = 0
    for w in weights:
        rows, cols = int(w.shape[0]), int(w.shape[1])
        padded_rows = _round_up(rows, 8)  # keep slices sublane-tile aligned
        blk = jnp.zeros((padded_rows, ncols), jnp.float32).at[:rows, :cols].set(w)
        blocks.append(blk)
        w_offsets.append(offset)
        offset += padded_rows
    for b in biases:
        cols = int(b.shape[1])
        blk = jnp.zeros((8, ncols), jnp.float32).at[:1, :cols].set(b)
        blocks.append(blk)
        b_offsets.append(offset)
        offset += 8

    slab = jnp.concatenate(blocks, axis=0)

    n_hidden = len(hidden_params)
    layer_meta = tuple(
        (w_offsets[i], int(weights[i].shape[0]), int(weights[i].shape[1]), b_offsets[i])
        for i in range(n_hidden)
    )
    head_meta = (w_offsets[n_hidden], int(weights[n_hidden].shape[0]),
                 int(weights[n_hidden].shape[1]), b_offsets[n_hidden])
    output_size = int(wa.shape[1])
    return slab, layer_meta, head_meta, output_size


def _make_mlp_kernel(layer_meta, head_meta, output_size):
    """Kernel: full MLP (hidden ReLU layers + fused tanh/sigmoid head) in VMEM."""

    def kernel(x_ref, p_ref, out_ref):
        h = x_ref[...]
        # Hidden layers: relu(h @ W + b). Static slices into the param slab are free.
        for w_off, in_dim, out_dim, b_off in layer_meta:
            w = p_ref[w_off:w_off + in_dim, 0:out_dim]
            b = p_ref[b_off:b_off + 1, 0:out_dim]
            h = jnp.maximum(
                jnp.dot(h, w, preferred_element_type=jnp.float32) + b, 0.0
            )

        # Fused head: one matmul, then ONE tanh covers both activations:
        #   tanh(z) on action columns, sigmoid(z) = 0.5*(1 + tanh(z/2)) on the
        #   last column (halves EUP work vs. computing tanh AND sigmoid).
        w_off, in_dim, out_total, b_off = head_meta
        w = p_ref[w_off:w_off + in_dim, 0:out_total]
        b = p_ref[b_off:b_off + 1, 0:out_total]
        z = jnp.dot(h, w, preferred_element_type=jnp.float32) + b
        is_sig = jax.lax.broadcasted_iota(jnp.int32, z.shape, 1) >= output_size
        t = jnp.tanh(jnp.where(is_sig, 0.5 * z, z))
        out_ref[...] = jnp.where(is_sig, 0.5 * (t + 1.0), t)

    return kernel


def network_forward(x, slab, *, layer_meta, head_meta, output_size, batch_tile=128):
    """Pallas implementation of Network.forward.

    Args:
      x:    [B, input_size] float32.
      slab: packed parameter slab from pack_network_params.
      layer_meta / head_meta / output_size: static metadata from pack_network_params.
      batch_tile: max batch rows per grid step (rounded up to a sublane multiple).

    Returns:
      (actions [B, output_size], sigmoid [B, 1])
    """
    B, F = x.shape
    R, C = slab.shape
    out_total = output_size + 1

    # One grid step per batch tile; params stay VMEM-resident across steps.
    tb = min(_round_up(B, 8), _round_up(batch_tile, 8))
    B_pad = _round_up(B, tb)
    if B_pad != B:
        x = jnp.pad(x, ((0, B_pad - B), (0, 0)))

    kernel = _make_mlp_kernel(layer_meta, head_meta, output_size)

    packed_out = pl.pallas_call(
        kernel,
        out_shape=jax.ShapeDtypeStruct((B_pad, out_total), jnp.float32),
        grid=(B_pad // tb,),
        in_specs=[
            pl.BlockSpec((tb, F), lambda i: (i, 0)),
            pl.BlockSpec((R, C), lambda i: (0, 0)),   # constant block -> resident
        ],
        out_specs=pl.BlockSpec((tb, out_total), lambda i: (i, 0)),
        compiler_params=pltpu.CompilerParams(dimension_semantics=("parallel",)),
    )(x, slab)

    return packed_out[:B, :output_size], packed_out[:B, output_size:]


def _reference_forward(x, hidden_params, act_params, sig_params):
    h = x
    for w, b in hidden_params:
        h = jnp.maximum(h @ w + b, 0.0)
    actions = jnp.tanh(h @ act_params[0] + act_params[1])
    sigmoid = jax.nn.sigmoid(h @ sig_params[0] + sig_params[1])
    return actions, sigmoid


if __name__ == "__main__":
    # Small shapes consistent with the module:
    #   input_size=16, hidden_sizes=[32, 32], output_size=8, batch=8
    B, input_size, output_size = 8, 16, 8
    hidden_sizes = [32, 32]

    key = jax.random.PRNGKey(0)
    keys = jax.random.split(key, 2 * (len(hidden_sizes) + 2) + 1)

    x = jax.random.normal(keys[0], (B, input_size), dtype=jnp.float32)

    # Deterministic parameter init (uniform, PyTorch-Linear-like scale), stored
    # pre-transposed as [in, out]; biases as [1, out].
    def init_linear(kw, kb, fan_in, fan_out):
        bound = 1.0 / jnp.sqrt(jnp.float32(fan_in))
        w = jax.random.uniform(kw, (fan_in, fan_out), jnp.float32, -bound, bound)
        b = jax.random.uniform(kb, (1, fan_out), jnp.float32, -bound, bound)
        return w, b

    hidden_params = []
    dims = [input_size] + hidden_sizes
    k = 1
    for i in range(len(hidden_sizes)):
        hidden_params.append(init_linear(keys[k], keys[k + 1], dims[i], dims[i + 1]))
        k += 2
    act_params = init_linear(keys[k], keys[k + 1], hidden_sizes[-1], output_size)
    k += 2
    sig_params = init_linear(keys[k], keys[k + 1], hidden_sizes[-1], 1)

    # Pack params ONCE on the host (fused head + single slab, static offsets).
    slab, layer_meta, head_meta, out_sz = pack_network_params(
        hidden_params, act_params, sig_params
    )
    slab = jax.block_until_ready(slab)

    fwd = jax.jit(functools.partial(
        network_forward,
        layer_meta=layer_meta,
        head_meta=head_meta,
        output_size=out_sz,
    ))

    actions, sigmoid = fwd(x, slab)
    jax.block_until_ready((actions, sigmoid))

    ref_actions, ref_sigmoid = _reference_forward(
        x, hidden_params, act_params, sig_params
    )
    assert actions.shape == (B, output_size) and actions.dtype == jnp.float32
    assert sigmoid.shape == (B, 1) and sigmoid.dtype == jnp.float32
    assert jnp.allclose(actions, ref_actions, atol=1e-5, rtol=1e-5)
    assert jnp.allclose(sigmoid, ref_sigmoid, atol=1e-5, rtol=1e-5)

    print("KERNEL_OK")
</pallas_src>

<mosaic_0001>
module attributes {stable_mosaic.version = 11 : i64} {
  func.func @kernel(%arg0: i32, %arg1: memref<8x16xf32, #tpu.memory_space<vmem>>, %arg2: memref<104x32xf32, #tpu.memory_space<vmem>>, %arg3: memref<8x9xf32, #tpu.memory_space<vmem>>) attributes {dimension_semantics = [#tpu.dimension_semantics<parallel>], iteration_bounds = array<i64: 1>, scalar_prefetch = 0 : i64, scratch_operands = 0 : i64, tpu.core_type = #tpu.core_type<tc>, window_params = [{transform_indices = @transform_0, window_bounds = array<i64: 8, 16>}, {pipeline_mode = #tpu.pipeline_mode<synchronous>, transform_indices = @transform_1, window_bounds = array<i64: 104, 32>}, {transform_indices = @transform_2, window_bounds = array<i64: 8, 9>}]} {
    %c0 = arith.constant 0 : index
    %c0_0 = arith.constant 0 : index
    %0 = vector.load %arg1[%c0, %c0_0] : memref<8x16xf32, #tpu.memory_space<vmem>>, vector<8x16xf32>
    %c0_1 = arith.constant 0 : index
    %c0_2 = arith.constant 0 : index
    %1 = vector.load %arg2[%c0_1, %c0_2] : memref<104x32xf32, #tpu.memory_space<vmem>>, vector<16x32xf32>
    %c80 = arith.constant 80 : index
    %c0_3 = arith.constant 0 : index
    %2 = vector.load %arg2[%c80, %c0_3] : memref<104x32xf32, #tpu.memory_space<vmem>>, vector<1x32xf32>
    %cst = arith.constant dense<0.000000e+00> : vector<8x32xf32>
    %3 = tpu.matmul %0, %1, %cst {dimension_numbers = #tpu.dot_dimension_numbers<[1], [0], [0], [1], [0, 0, 1, 1], [], []>} : vector<8x16xf32>, vector<16x32xf32>, vector<8x32xf32> -> vector<8x32xf32>
    %4 = vector.broadcast %2 : vector<1x32xf32> to vector<8x32xf32>
    %5 = arith.addf %3, %4 : vector<8x32xf32>
    %cst_4 = arith.constant 0.000000e+00 : f32
    %6 = vector.broadcast %cst_4 : f32 to vector<8x32xf32>
    %7 = arith.maximumf %5, %6 : vector<8x32xf32>
    %c16 = arith.constant 16 : index
    %c0_5 = arith.constant 0 : index
    %8 = vector.load %arg2[%c16, %c0_5] : memref<104x32xf32, #tpu.memory_space<vmem>>, vector<32x32xf32>
    %c88 = arith.constant 88 : index
    %c0_6 = arith.constant 0 : index
    %9 = vector.load %arg2[%c88, %c0_6] : memref<104x32xf32, #tpu.memory_space<vmem>>, vector<1x32xf32>
    %cst_7 = arith.constant dense<0.000000e+00> : vector<8x32xf32>
    %10 = tpu.matmul %7, %8, %cst_7 {dimension_numbers = #tpu.dot_dimension_numbers<[1], [0], [0], [1], [0, 0, 1, 1], [], []>} : vector<8x32xf32>, vector<32x32xf32>, vector<8x32xf32> -> vector<8x32xf32>
    %11 = vector.broadcast %9 : vector<1x32xf32> to vector<8x32xf32>
    %12 = arith.addf %10, %11 : vector<8x32xf32>
    %cst_8 = arith.constant 0.000000e+00 : f32
    %13 = vector.broadcast %cst_8 : f32 to vector<8x32xf32>
    %14 = arith.maximumf %12, %13 : vector<8x32xf32>
    %c48 = arith.constant 48 : index
    %c0_9 = arith.constant 0 : index
    %15 = vector.load %arg2[%c48, %c0_9] : memref<104x32xf32, #tpu.memory_space<vmem>>, vector<32x9xf32>
    %c96 = arith.constant 96 : index
    %c0_10 = arith.constant 0 : index
    %16 = vector.load %arg2[%c96, %c0_10] : memref<104x32xf32, #tpu.memory_space<vmem>>, vector<1x9xf32>
    %cst_11 = arith.constant dense<0.000000e+00> : vector<8x9xf32>
    %17 = tpu.matmul %14, %15, %cst_11 {dimension_numbers = #tpu.dot_dimension_numbers<[1], [0], [0], [1], [0, 0, 1, 1], [], []>} : vector<8x32xf32>, vector<32x9xf32>, vector<8x9xf32> -> vector<8x9xf32>
    %18 = vector.broadcast %16 : vector<1x9xf32> to vector<8x9xf32>
    %19 = arith.addf %17, %18 : vector<8x9xf32>
    %20 = tpu.iota {dimensions = array<i32: 1>} : vector<8x9xi32>
    %c8_i32 = arith.constant 8 : i32
    %21 = vector.broadcast %c8_i32 : i32 to vector<8x9xi32>
    %22 = arith.cmpi sge, %20, %21 : vector<8x9xi32>
    %cst_12 = arith.constant 5.000000e-01 : f32
    %23 = vector.broadcast %cst_12 : f32 to vector<8x9xf32>
    %24 = arith.mulf %23, %19 : vector<8x9xf32>
    %25 = arith.select %22, %24, %19 : vector<8x9xi1>, vector<8x9xf32>
    %26 = math.tanh %25 : vector<8x9xf32>
    %cst_13 = arith.constant 1.000000e+00 : f32
    %27 = vector.broadcast %cst_13 : f32 to vector<8x9xf32>
    %28 = arith.addf %26, %27 : vector<8x9xf32>
    %cst_14 = arith.constant 5.000000e-01 : f32
    %29 = vector.broadcast %cst_14 : f32 to vector<8x9xf32>
    %30 = arith.mulf %29, %28 : vector<8x9xf32>
    %31 = arith.select %22, %30, %26 : vector<8x9xi1>, vector<8x9xf32>
    %c0_15 = arith.constant 0 : index
    %c0_16 = arith.constant 0 : index
    %32 = vector.load %arg3[%c0_15, %c0_16] : memref<8x9xf32, #tpu.memory_space<vmem>>, vector<8x9xf32>
    tpu.vector_store %arg3[%c0_15, %c0_16], %31 {strides = array<i32>} : memref<8x9xf32, #tpu.memory_space<vmem>>, vector<8x9xf32>,
    return
  }
  func.func @transform_0(%arg0: i32) -> (i32, i32) {
    %c0_i32 = arith.constant 0 : i32
    %c0_i32_0 = arith.constant 0 : i32
    return %arg0, %c0_i32 : i32, i32
  }
  func.func @transform_1(%arg0: i32) -> (i32, i32) {
    %c0_i32 = arith.constant 0 : i32
    %c0_i32_0 = arith.constant 0 : i32
    %c0_i32_1 = arith.constant 0 : i32
    return %c0_i32, %c0_i32_0 : i32, i32
  }
  func.func @transform_2(%arg0: i32) -> (i32, i32) {
    %c0_i32 = arith.constant 0 : i32
    %c0_i32_0 = arith.constant 0 : i32
    return %arg0, %c0_i32 : i32, i32
  }
}

</mosaic_0001>

<llo_original>
// kernel: network_forward.1
$region0: #{network_forward.1}
  #allocation0 [shape = 'u32[]', space=smem, size = 0x4, offset = 0x4, fixed_abs, tag = 'smem constant byte address 0x4 - core index']
  #allocation1 [shape = 'u32[144,128]{1,0:T(1,128)}', space=vmem, size = 0x12000, scoped, tag = 'internal scratch']
  %s0 = inlined_call_operand.vmem [shape: f32[8,16], index: 0, kind: input, shape index: {}]
  %s1 = inlined_call_operand.vmem [shape: f32[104,32], index: 1, kind: input, shape index: {}]
  %s2 = inlined_call_operand.vmem [shape: f32[8,9], index: 2, kind: output, shape index: {}]
  %s3 = sld [smem:[#allocation0]]
  $region18: #{network_forward.1} parent=0
    _
  %s5 = ssub.s32 1, %s3
  %s6 = scalar_select 0, %s5, %s3
  // Predicated region
  $region2: #{network_forward.1} parent=0 // pred_check
    _
  $region3: #{network_forward.1} parent=0 // pred_check_branch
    %8 = sbr.rel (0) target = $region5
  $region4: #{network_forward.1} parent=0 // pred_region
    _
  $region5: #{network_forward.1} parent=0 // pred_fallthru
    _
  // Predicated region
  $region6: #{network_forward.1} parent=0 // pred_check
    _
  $region7: #{network_forward.1} parent=0 // pred_check_branch
    %10 = sbr.rel (0) target = $region9
  $region8: #{network_forward.1} parent=0 // pred_region
    _
  $region9: #{network_forward.1} parent=0 // pred_fallthru
    _
  %v11 = vld [vmem:[%s0] sm:$0xff]
  %v12 = vld [vmem:[%s1] sm:$0xff]
  %v13 = vld [vmem:[%s1 + $0x8] sm:$0xff]
  %v14 = vld [vmem:[%s1 + $0x50] sm:$0x1]
  %v15 = vlaneseq
  %v16 = vshrl.u32 %v15, 7
  %v17 = vsub.s32 0, %v16
  %v18 = vrot.slane %v14, %v17
  %vm19 = vcmask 130048
  %v21 = vsel %vm19, %v11, 0
  %23 = vmatprep.subr.mxu0 0.0
  %24 = vmatpush1.msra.mxu0 %v12
  %25 = vmatprep.subr.mxu0 0.0
  %26 = vmatpush1.msra.mxu0 %v13
  %27 = vmatprep.subr.mxu0 0.0
  %28 = vmatpush1.msra.mxu0 0.0
  %29 = vmatprep.subr.mxu0 0.0
  %30 = vmatpush1.msra.mxu0 0.0
  %31 = vmatprep.subr.mxu0 0.0
  %32 = vmatpush1.msra.mxu0 0.0
  %33 = vmatprep.subr.mxu0 0.0
  %34 = vmatpush1.msra.mxu0 0.0
  %35 = vmatprep.subr.mxu0 0.0
  %36 = vmatpush1.msra.mxu0 0.0
  %37 = vmatprep.subr.mxu0 0.0
  %38 = vmatpush1.msra.mxu0 0.0
  %39 = vmatprep.subr.mxu0 0.0
  %40 = vmatpush1.msra.mxu0 0.0
  %41 = vmatprep.subr.mxu0 0.0
  %42 = vmatpush1.msra.mxu0 0.0
  %43 = vmatprep.subr.mxu0 0.0
  %44 = vmatpush1.msra.mxu0 0.0
  %45 = vmatprep.subr.mxu0 0.0
  %46 = vmatpush1.msra.mxu0 0.0
  %47 = vmatprep.subr.mxu0 0.0
  %48 = vmatpush1.msra.mxu0 0.0
  %49 = vmatprep.subr.mxu0 0.0
  %50 = vmatpush1.msra.mxu0 0.0
  %51 = vmatprep.subr.mxu0 0.0
  %52 = vmatpush1.msra.mxu0 0.0
  %53 = vmatprep.subr.mxu0 0.0
  %54 = vmatpush1.msra.mxu0 0.0
  %55 = vmatprep.subr.mxu0 0.0
  %56 = vmatpush1.msra.mxu0 0.0
  %57 = vmatprep.subr.mxu0 0.0
  %58 = vmatpush1.msra.mxu0 0.0
  %59 = vmatprep.subr.mxu0 0.0
  %60 = vmatpush1.msra.mxu0 0.0
  %61 = vmatprep.subr.mxu0 0.0
  %62 = vmatpush1.msra.mxu0 0.0
  %63 = vmatprep.subr.mxu0 0.0
  %64 = vmatpush1.msra.mxu0 0.0
  %65 = vmatprep.subr.mxu0 0.0
  %66 = vmatpush1.msra.mxu0 0.0
  %67 = vmatprep.subr.mxu0 0.0
  %68 = vmatpush1.msra.mxu0 0.0
  %69 = vmatprep.subr.mxu0 0.0
  %70 = vmatpush1.msra.mxu0 0.0
  %71 = vmatprep.subr.mxu0 0.0
  %72 = vmatpush1.msra.mxu0 0.0
  %73 = vmatprep.subr.mxu0 0.0
  %74 = vmatpush1.msra.mxu0 0.0
  %75 = vmatprep.subr.mxu0 0.0
  %76 = vmatpush1.msra.mxu0 0.0
  %77 = vmatprep.subr.mxu0 0.0
  %78 = vmatpush1.msra.mxu0 0.0
  %79 = vmatprep.subr.mxu0 0.0
  %80 = vmatpush1.msra.mxu0 0.0
  %81 = vmatprep.subr.mxu0 0.0
  %82 = vmatpush1.msra.mxu0 0.0
  %83 = vmatprep.subr.mxu0 0.0
  %84 = vmatpush1.msra.mxu0 0.0
  %85 = vmatprep.subr.mxu0 0.0
  %86 = vmatpush1.msra.mxu0 0.0
  %87 = vmatprep.mubr.f32.mxu0 0.0
  %88 = vmatmul.mubr.f32.gmra.mrb[0].mxu0 %v21
  %v89 = vpop.f32.mrb[0].mxu0
  %v90 = vadd.f32 %v18, %v89
  %v91 = vpop.f32.mrb[0].mxu0
  %92 = vdwg.mxu0
  %v93 = vmax.f32 %v90, 0.0
  %v94 = vld [vmem:[%s1 + $0x10] sm:$0xff]
  %v95 = vld [vmem:[%s1 + $0x18] sm:$0xff]
  %v96 = vld [vmem:[%s1 + $0x20] sm:$0xff]
  %v97 = vld [vmem:[%s1 + $0x28] sm:$0xff]
  %v98 = vld [vmem:[%s1 + $0x58] sm:$0x1]
  %v99 = vlaneseq
  %v100 = vshrl.u32 %v99, 7
  %v101 = vsub.s32 0, %v100
  %v102 = vrot.slane %v98, %v101
  %vm103 = vcmask 261120
  %v105 = vsel %vm103, %v93, 0
  %107 = vmatprep.subr.mxu0 0.0
  %108 = vmatpush1.msra.mxu0 %v94
  %109 = vmatprep.subr.mxu0 0.0
  %110 = vmatpush1.msra.mxu0 %v95
  %111 = vmatprep.subr.mxu0 0.0
  %112 = vmatpush1.msra.mxu0 %v96
  %113 = vmatprep.subr.mxu0 0.0
  %114 = vmatpush1.msra.mxu0 %v97
  %115 = vmatprep.subr.mxu0 0.0
  %116 = vmatpush1.msra.mxu0 0.0
  %117 = vmatprep.subr.mxu0 0.0
  %118 = vmatpush1.msra.mxu0 0.0
  %119 = vmatprep.subr.mxu0 0.0
  %120 = vmatpush1.msra.mxu0 0.0
  %121 = vmatprep.subr.mxu0 0.0
  %122 = vmatpush1.msra.mxu0 0.0
  %123 = vmatprep.subr.mxu0 0.0
  %124 = vmatpush1.msra.mxu0 0.0
  %125 = vmatprep.subr.mxu0 0.0
  %126 = vmatpush1.msra.mxu0 0.0
  %127 = vmatprep.subr.mxu0 0.0
  %128 = vmatpush1.msra.mxu0 0.0
  %129 = vmatprep.subr.mxu0 0.0
  %130 = vmatpush1.msra.mxu0 0.0
  %131 = vmatprep.subr.mxu0 0.0
  %132 = vmatpush1.msra.mxu0 0.0
  %133 = vmatprep.subr.mxu0 0.0
  %134 = vmatpush1.msra.mxu0 0.0
  %135 = vmatprep.subr.mxu0 0.0
  %136 = vmatpush1.msra.mxu0 0.0
  %137 = vmatprep.subr.mxu0 0.0
  %138 = vmatpush1.msra.mxu0 0.0
  %139 = vmatprep.subr.mxu0 0.0
  %140 = vmatpush1.msra.mxu0 0.0
  %141 = vmatprep.subr.mxu0 0.0
  %142 = vmatpush1.msra.mxu0 0.0
  %143 = vmatprep.subr.mxu0 0.0
  %144 = vmatpush1.msra.mxu0 0.0
  %145 = vmatprep.subr.mxu0 0.0
  %146 = vmatpush1.msra.mxu0 0.0
  %147 = vmatprep.subr.mxu0 0.0
  %148 = vmatpush1.msra.mxu0 0.0
  %149 = vmatprep.subr.mxu0 0.0
  %150 = vmatpush1.msra.mxu0 0.0
  %151 = vmatprep.subr.mxu0 0.0
  %152 = vmatpush1.msra.mxu0 0.0
  %153 = vmatprep.subr.mxu0 0.0
  %154 = vmatpush1.msra.mxu0 0.0
  %155 = vmatprep.subr.mxu0 0.0
  %156 = vmatpush1.msra.mxu0 0.0
  %157 = vmatprep.subr.mxu0 0.0
  %158 = vmatpush1.msra.mxu0 0.0
  %159 = vmatprep.subr.mxu0 0.0
  %160 = vmatpush1.msra.mxu0 0.0
  %161 = vmatprep.subr.mxu0 0.0
  %162 = vmatpush1.msra.mxu0 0.0
  %163 = vmatprep.subr.mxu0 0.0
  %164 = vmatpush1.msra.mxu0 0.0
  %165 = vmatprep.subr.mxu0 0.0
  %166 = vmatpush1.msra.mxu0 0.0
  %167 = vmatprep.subr.mxu0 0.0
  %168 = vmatpush1.msra.mxu0 0.0
  %169 = vmatprep.subr.mxu0 0.0
  %170 = vmatpush1.msra.mxu0 0.0
  %171 = vmatprep.mubr.f32.mxu0 0.0
  %172 = vmatmul.mubr.f32.gmra.mrb[0].mxu0 %v105
  %v173 = vpop.f32.mrb[0].mxu0
  %v174 = vadd.f32 %v102, %v173
  %v175 = vpop.f32.mrb[0].mxu0
  %176 = vdwg.mxu0
  %v177 = vmax.f32 %v174, 0.0
  %v178 = vld [vmem:[%s1 + $0x30] sm:$0xff]
  %v179 = vld [vmem:[%s1 + $0x38] sm:$0xff]
  %v180 = vld [vmem:[%s1 + $0x40] sm:$0xff]
  %v181 = vld [vmem:[%s1 + $0x48] sm:$0xff]
  %v182 = vld [vmem:[%s1 + $0x60] sm:$0x1]
  %v183 = vlaneseq
  %v184 = vshrl.u32 %v183, 7
  %v185 = vsub.s32 0, %v184
  %v186 = vrot.slane %v182, %v185
  %v188 = vsel %vm103, %v177, 0
  %190 = vmatprep.subr.mxu0 0.0
  %191 = vmatpush1.msra.mxu0 %v178
  %192 = vmatprep.subr.mxu0 0.0
  %193 = vmatpush1.msra.mxu0 %v179
  %194 = vmatprep.subr.mxu0 0.0
  %195 = vmatpush1.msra.mxu0 %v180
  %196 = vmatprep.subr.mxu0 0.0
  %197 = vmatpush1.msra.mxu0 %v181
  %198 = vmatprep.subr.mxu0 0.0
  %199 = vmatpush1.msra.mxu0 0.0
  %200 = vmatprep.subr.mxu0 0.0
  %201 = vmatpush1.msra.mxu0 0.0
  %202 = vmatprep.subr.mxu0 0.0
  %203 = vmatpush1.msra.mxu0 0.0
  %204 = vmatprep.subr.mxu0 0.0
  %205 = vmatpush1.msra.mxu0 0.0
  %206 = vmatprep.subr.mxu0 0.0
  %207 = vmatpush1.msra.mxu0 0.0
  %208 = vmatprep.subr.mxu0 0.0
  %209 = vmatpush1.msra.mxu0 0.0
  %210 = vmatprep.subr.mxu0 0.0
  %211 = vmatpush1.msra.mxu0 0.0
  %212 = vmatprep.subr.mxu0 0.0
  %213 = vmatpush1.msra.mxu0 0.0
  %214 = vmatprep.subr.mxu0 0.0
  %215 = vmatpush1.msra.mxu0 0.0
  %216 = vmatprep.subr.mxu0 0.0
  %217 = vmatpush1.msra.mxu0 0.0
  %218 = vmatprep.subr.mxu0 0.0
  %219 = vmatpush1.msra.mxu0 0.0
  %220 = vmatprep.subr.mxu0 0.0
  %221 = vmatpush1.msra.mxu0 0.0
  %222 = vmatprep.subr.mxu0 0.0
  %223 = vmatpush1.msra.mxu0 0.0
  %224 = vmatprep.subr.mxu0 0.0
  %225 = vmatpush1.msra.mxu0 0.0
  %226 = vmatprep.subr.mxu0 0.0
  %227 = vmatpush1.msra.mxu0 0.0
  %228 = vmatprep.subr.mxu0 0.0
  %229 = vmatpush1.msra.mxu0 0.0
  %230 = vmatprep.subr.mxu0 0.0
  %231 = vmatpush1.msra.mxu0 0.0
  %232 = vmatprep.subr.mxu0 0.0
  %233 = vmatpush1.msra.mxu0 0.0
  %234 = vmatprep.subr.mxu0 0.0
  %235 = vmatpush1.msra.mxu0 0.0
  %236 = vmatprep.subr.mxu0 0.0
  %237 = vmatpush1.msra.mxu0 0.0
  %238 = vmatprep.subr.mxu0 0.0
  %239 = vmatpush1.msra.mxu0 0.0
  %240 = vmatprep.subr.mxu0 0.0
  %241 = vmatpush1.msra.mxu0 0.0
  %242 = vmatprep.subr.mxu0 0.0
  %243 = vmatpush1.msra.mxu0 0.0
  %244 = vmatprep.subr.mxu0 0.0
  %245 = vmatpush1.msra.mxu0 0.0
  %246 = vmatprep.subr.mxu0 0.0
  %247 = vmatpush1.msra.mxu0 0.0
  %248 = vmatprep.subr.mxu0 0.0
  %249 = vmatpush1.msra.mxu0 0.0
  %250 = vmatprep.subr.mxu0 0.0
  %251 = vmatpush1.msra.mxu0 0.0
  %252 = vmatprep.subr.mxu0 0.0
  %253 = vmatpush1.msra.mxu0 0.0
  %254 = vmatprep.mubr.f32.mxu0 0.0
  %255 = vmatmul.mubr.f32.gmra.mrb[0].mxu0 %v188
  %v256 = vpop.f32.mrb[0].mxu0
  %v257 = vadd.f32 %v186, %v256
  %v258 = vpop.f32.mrb[0].mxu0
  %259 = vdwg.mxu0
  %v260 = vlaneseq
  %v261 = vand.u32 %v260, 127
  %vm262 = vcmp.ge.s32.totalorder %v261, 8
  %v263 = vmul.f32 %v257, 0.5
  %v264 = vsel %vm262, %v263, %v257
  %v265 = vtanh.pop %v264
  %v266 = vadd.f32 %v265, 1.0
  %v267 = vmul.f32 %v266, 0.5
  %v268 = vsel %vm262, %v267, %v265
  %vm269 = vcmask 72704
  %270 = vst.msk [vmem:[%s2] sm:$0xff] %vm269, %v268
  // Predicated region
  $region10: #{network_forward.1} parent=0 // pred_check
    _
  $region11: #{network_forward.1} parent=0 // pred_check_branch
    %272 = sbr.rel (0) target = $region13
  $region12: #{network_forward.1} parent=0 // pred_region
    _
  $region13: #{network_forward.1} parent=0 // pred_fallthru
    _
  // Predicated region
  $region14: #{network_forward.1} parent=0 // pred_check
    _
  $region15: #{network_forward.1} parent=0 // pred_check_branch
    %274 = sbr.rel (0) target = $region17
  $region16: #{network_forward.1} parent=0 // pred_region
    _
  $region17: #{network_forward.1} parent=0 // pred_fallthru
    _

</llo_original>
